<compile_context>
chip_gen: v7x
topology: tpu7x:2x2x1
jax: 0.10.0
libtpu: 0.0.40
codegen_flags: <defaults>
</compile_context>

<pallas_src>
import functools

import jax
import jax.numpy as jnp
from jax import lax
from jax.experimental import pallas as pl
from jax.experimental.pallas import tpu as pltpu

LANES = 128
TARGET_BLOCK_BYTES = 4 << 20   # ~4 MiB of native-dtype input per block
VMEM_LIMIT_BYTES = 48 << 20    # 2 inputs x 2 bufs x 4 MiB + temporaries, fits v7x/v6e/v5e


def _round_up(v, m):
    return ((v + m - 1) // m) * m


def _charbonnier_kernel(x_ref, y_ref, out_ref, *, eps, tile_rows, rows_total):
    x = x_ref[...].astype(jnp.float32)
    y = y_ref[...].astype(jnp.float32)
    d = x - y
    val = jnp.sqrt(d * d + jnp.float32(eps))

    if rows_total % tile_rows == 0:
        # Perfectly tiled: no masking anywhere (common case, incl. single full block).
        out_ref[...] = jnp.sum(val, axis=0, keepdims=True)
    else:
        i = pl.program_id(0)
        last = pl.num_programs(0) - 1

        @pl.when(i < last)
        def _():
            out_ref[...] = jnp.sum(val, axis=0, keepdims=True)

        @pl.when(i == last)
        def _():
            # Mask garbage rows of the partial edge block.
            grow = lax.broadcasted_iota(jnp.int32, val.shape, 0) + i * tile_rows
            v = jnp.where(grow < rows_total, val, jnp.float32(0.0))
            out_ref[...] = jnp.sum(v, axis=0, keepdims=True)


def _charbonnier_loss(x, y, eps=1e-6):
    assert x.shape == y.shape
    n = x.size
    eps_f = jnp.float32(eps)

    xf = x.reshape(-1)   # contiguous flatten: free under XLA
    yf = y.reshape(-1)

    n_main = (n // LANES) * LANES
    tail = n - n_main

    if tail:
        # <=127 ragged elements: tiny plain-jnp sqrt-sum instead of padding the inputs.
        xt = xf[n_main:].astype(jnp.float32)
        yt = yf[n_main:].astype(jnp.float32)
        dt = xt - yt
        tail_sum = jnp.sum(jnp.sqrt(dt * dt + eps_f))
    else:
        tail_sum = jnp.float32(0.0)

    if n_main == 0:
        return tail_sum

    # TODO(synk): when numel % 128 != 0 this prefix slice materializes one copy of the
    # main part in HBM; the aligned (common) case below is fully zero-copy.
    x_main = xf if tail == 0 else xf[:n_main]
    y_main = yf if tail == 0 else yf[:n_main]

    rows = n_main // LANES
    x2d = x_main.reshape(rows, LANES)
    y2d = y_main.reshape(rows, LANES)

    itemsize = jnp.dtype(x.dtype).itemsize
    sublane = max(8, 32 // max(1, itemsize))              # 8 f32 / 16 bf16 / 32 int8
    target_rows = max(sublane, TARGET_BLOCK_BYTES // (LANES * itemsize))

    if rows <= target_rows:
        tile_rows = rows                                   # single full-extent block
    else:
        tile_rows = _round_up(target_rows, sublane)
        num_blocks = -(-rows // tile_rows)
        # Prefer an even block count so v7x's two TensorCores split the grid evenly.
        if num_blocks > 1 and num_blocks % 2 == 1:
            tile_rows = min(tile_rows,
                            _round_up(-(-rows // (num_blocks + 1)), sublane))
    num_blocks = -(-rows // tile_rows)

    kernel = functools.partial(
        _charbonnier_kernel, eps=float(eps), tile_rows=tile_rows, rows_total=rows)

    cost = pl.CostEstimate(
        flops=4 * n_main,
        transcendentals=n_main,
        bytes_accessed=2 * n_main * itemsize + num_blocks * LANES * 4,
    )

    partials = pl.pallas_call(
        kernel,
        out_shape=jax.ShapeDtypeStruct((num_blocks, LANES), jnp.float32),
        grid_spec=pltpu.PrefetchScalarGridSpec(
            num_scalar_prefetch=0,
            grid=(num_blocks,),
            in_specs=[
                pl.BlockSpec((tile_rows, LANES), lambda i: (i, 0)),
                pl.BlockSpec((tile_rows, LANES), lambda i: (i, 0)),
            ],
            out_specs=pl.BlockSpec((1, LANES), lambda i: (i, 0)),
        ),
        compiler_params=pltpu.CompilerParams(
            dimension_semantics=("parallel",),
            vmem_limit_bytes=VMEM_LIMIT_BYTES,
        ),
        cost_estimate=cost,
    )(x2d, y2d)

    # Tiny cross-lane / cross-block reduction, fused by XLA under jit.
    return jnp.sum(partials) + tail_sum


charbonnier_loss = jax.jit(_charbonnier_loss, static_argnames=("eps",))


def _reference(x, y, eps):
    d = x.astype(jnp.float32) - y.astype(jnp.float32)
    return jnp.sum(jnp.sqrt(d * d + jnp.float32(eps)))


if __name__ == "__main__":
    key = jax.random.PRNGKey(0)
    kx, ky = jax.random.split(key)

    # Main check: NCHW image-like input (aligned, zero-copy fast path).
    shape = (2, 4, 16, 16)
    x = jax.random.normal(kx, shape, dtype=jnp.float32)
    y = jax.random.normal(ky, shape, dtype=jnp.float32)
    loss = charbonnier_loss(x, y, eps=1e-6)
    jax.block_until_ready(loss)
    ref = _reference(x, y, 1e-6)
    assert jnp.allclose(loss, ref, rtol=1e-5, atol=1e-5), (loss, ref)

    # Ragged-size check (numel not a multiple of 128): kernel + jnp tail path.
    shape2 = (2, 3, 5, 7)
    x2 = jax.random.normal(kx, shape2, dtype=jnp.float32)
    y2 = jax.random.normal(ky, shape2, dtype=jnp.float32)
    loss2 = charbonnier_loss(x2, y2, eps=1e-6)
    jax.block_until_ready(loss2)
    ref2 = _reference(x2, y2, 1e-6)
    assert jnp.allclose(loss2, ref2, rtol=1e-5, atol=1e-5), (loss2, ref2)

    print("KERNEL_OK")
</pallas_src>

<mosaic_0001>
module attributes {stable_mosaic.version = 11 : i64} {
  func.func @_charbonnier_kernel(%arg0: i32, %arg1: memref<16x128xf32, #tpu.memory_space<vmem>>, %arg2: memref<16x128xf32, #tpu.memory_space<vmem>>, %arg3: memref<1x128xf32, #tpu.memory_space<vmem>>) attributes {dimension_semantics = [#tpu.dimension_semantics<parallel>], iteration_bounds = array<i64: 1>, scalar_prefetch = 0 : i64, scratch_operands = 0 : i64, tpu.core_type = #tpu.core_type<tc>, window_params = [{transform_indices = @transform_0, window_bounds = array<i64: 16, 128>}, {transform_indices = @transform_1, window_bounds = array<i64: 16, 128>}, {transform_indices = @transform_2, window_bounds = array<i64: 1, 128>}]} {
    %c0 = arith.constant 0 : index
    %c0_0 = arith.constant 0 : index
    %0 = vector.load %arg1[%c0, %c0_0] : memref<16x128xf32, #tpu.memory_space<vmem>>, vector<16x128xf32>
    %c0_1 = arith.constant 0 : index
    %c0_2 = arith.constant 0 : index
    %1 = vector.load %arg2[%c0_1, %c0_2] : memref<16x128xf32, #tpu.memory_space<vmem>>, vector<16x128xf32>
    %2 = arith.subf %0, %1 : vector<16x128xf32>
    %3 = arith.mulf %2, %2 : vector<16x128xf32>
    %cst = arith.constant 9.99999997E-7 : f32
    %4 = vector.broadcast %cst : f32 to vector<16x128xf32>
    %5 = arith.addf %3, %4 : vector<16x128xf32>
    %6 = math.sqrt %5 : vector<16x128xf32>
    %cst_3 = arith.constant dense<0.000000e+00> : vector<128xf32>
    %7 = vector.multi_reduction <add>, %6, %cst_3 [0] : vector<16x128xf32> to vector<128xf32>
    %8 = vector.shape_cast %7 : vector<128xf32> to vector<1x128xf32>
    %c0_4 = arith.constant 0 : index
    %c0_5 = arith.constant 0 : index
    %9 = vector.load %arg3[%c0_4, %c0_5] : memref<1x128xf32, #tpu.memory_space<vmem>>, vector<1x128xf32>
    tpu.vector_store %arg3[%c0_4, %c0_5], %8 {strides = array<i32>} : memref<1x128xf32, #tpu.memory_space<vmem>>, vector<1x128xf32>,
    return
  }
  func.func @transform_0(%arg0: i32) -> (i32, i32) {
    %c0_i32 = arith.constant 0 : i32
    %c0_i32_0 = arith.constant 0 : i32
    return %arg0, %c0_i32 : i32, i32
  }
  func.func @transform_1(%arg0: i32) -> (i32, i32) {
    %c0_i32 = arith.constant 0 : i32
    %c0_i32_0 = arith.constant 0 : i32
    return %arg0, %c0_i32 : i32, i32
  }
  func.func @transform_2(%arg0: i32) -> (i32, i32) {
    %c0_i32 = arith.constant 0 : i32
    %c0_i32_0 = arith.constant 0 : i32
    return %arg0, %c0_i32 : i32, i32
  }
}

</mosaic_0001>

<llo_original>
// kernel: _charbonnier_loss.1
$region0: #{_charbonnier_loss.1}
  #allocation0 [shape = 'u32[]', space=smem, size = 0x4, offset = 0x4, fixed_abs, tag = 'smem constant byte address 0x4 - core index']
  #allocation1 [shape = 'u32[144,128]{1,0:T(1,128)}', space=vmem, size = 0x12000, scoped, tag = 'internal scratch']
  %s0 = inlined_call_operand.vmem [shape: f32[16,128], index: 0, kind: input, shape index: {}]
  %s1 = inlined_call_operand.vmem [shape: f32[16,128], index: 1, kind: input, shape index: {}]
  %s2 = inlined_call_operand.vmem [shape: f32[1,128], index: 2, kind: output, shape index: {}]
  %s3 = sld [smem:[#allocation0]]
  $region18: #{_charbonnier_loss.1} parent=0
    _
  %s5 = ssub.s32 1, %s3
  %s6 = scalar_select 0, %s5, %s3
  // Predicated region
  $region2: #{_charbonnier_loss.1} parent=0 // pred_check
    _
  $region3: #{_charbonnier_loss.1} parent=0 // pred_check_branch
    %8 = sbr.rel (0) target = $region5
  $region4: #{_charbonnier_loss.1} parent=0 // pred_region
    _
  $region5: #{_charbonnier_loss.1} parent=0 // pred_fallthru
    _
  // Predicated region
  $region6: #{_charbonnier_loss.1} parent=0 // pred_check
    _
  $region7: #{_charbonnier_loss.1} parent=0 // pred_check_branch
    %10 = sbr.rel (0) target = $region9
  $region8: #{_charbonnier_loss.1} parent=0 // pred_region
    _
  $region9: #{_charbonnier_loss.1} parent=0 // pred_fallthru
    _
  %v11 = vld [vmem:[%s0] sm:$0xff]
  %v12 = vld [vmem:[%s0 + $0x8] sm:$0xff]
  %v13 = vld [vmem:[%s1] sm:$0xff]
  %v14 = vld [vmem:[%s1 + $0x8] sm:$0xff]
  %v15 = vsub.f32 %v11, %v13
  %v16 = vsub.f32 %v12, %v14
  %v17 = vmul.f32 %v15, %v15
  %v18 = vmul.f32 %v16, %v16
  %v19 = vadd.f32 %v17, 1e-06
  %v20 = vadd.f32 %v18, 1e-06
  %v21 = vrsqrt.pop %v19
  %v22 = vmul.f32 %v19, %v21
  %vm23 = vcmp.eq.f32.partialorder %v19, inf
  %v24 = vsel %vm23, %v19, %v22
  %vm25 = vcmp.eq.f32.partialorder %v19, 0.0
  %v26 = vand.u32 %v19, 2147483648
  %v27 = vsel %vm25, %v26, %v24
  %v28 = vrsqrt.pop %v20
  %v29 = vmul.f32 %v20, %v28
  %vm30 = vcmp.eq.f32.partialorder %v20, inf
  %v31 = vsel %vm30, %v20, %v29
  %vm32 = vcmp.eq.f32.partialorder %v20, 0.0
  %v33 = vand.u32 %v20, 2147483648
  %v34 = vsel %vm32, %v33, %v31
  %v35 = vadd.f32 %v27, %v34
  %v36 = vrot.slane %v35, 4
  %v37 = vadd.f32 %v35, %v36
  %v38 = vrot.slane %v37, 2
  %v39 = vadd.f32 %v37, %v38
  %v40 = vrot.slane %v39, 1
  %v41 = vadd.f32 %v39, %v40
  %42 = vst [vmem:[%s2] sm:$0x1] %v41
  // Predicated region
  $region10: #{_charbonnier_loss.1} parent=0 // pred_check
    _
  $region11: #{_charbonnier_loss.1} parent=0 // pred_check_branch
    %44 = sbr.rel (0) target = $region13
  $region12: #{_charbonnier_loss.1} parent=0 // pred_region
    _
  $region13: #{_charbonnier_loss.1} parent=0 // pred_fallthru
    _
  // Predicated region
  $region14: #{_charbonnier_loss.1} parent=0 // pred_check
    _
  $region15: #{_charbonnier_loss.1} parent=0 // pred_check_branch
    %46 = sbr.rel (0) target = $region17
  $region16: #{_charbonnier_loss.1} parent=0 // pred_region
    _
  $region17: #{_charbonnier_loss.1} parent=0 // pred_fallthru
    _

</llo_original>
